<compile_context>
chip_gen: v5e
topology: v5e:2x2
jax: 0.10.0
libtpu: 0.0.40
codegen_flags: <defaults>
</compile_context>

<pallas_src>
import math

import jax
import jax.numpy as jnp
from jax import lax
from jax.experimental import pallas as pl
from jax.experimental.pallas import tpu as pltpu


_VMEM_LIMIT_BYTES = 32 * 1024 * 1024    # safe scoped-VMEM limit on v5e/v6e/v7x
_VMEM_BUDGET_BYTES = 24 * 1024 * 1024   # what we plan tiles against (headroom under limit)
_MAX_X_TILE_BYTES = 8 * 1024 * 1024     # per x tile (Pallas double-buffers it)


def _cdiv(a, b):
    return -(-a // b)


def _round_up(a, m):
    return _cdiv(a, m) * m


def _choose_row_tile(n_rows, row_bytes, x_budget_bytes):
    """Row tile (multiple of 8): fits the double-buffered x budget, gives >= 4 grid steps
    when the batch allows it, and (best effort) an even step count for v7x dual-TC sharding."""
    n_pad = _round_up(max(n_rows, 1), 8)
    tb_vmem = max(8, (x_budget_bytes // (2 * row_bytes)) // 8 * 8)
    # cap at ~1/4 of the batch so large batches get at least 4 pipelined steps
    tb = min(tb_vmem, n_pad, max(8, _round_up(_cdiv(n_pad, 4), 8)))
    steps = _cdiv(n_rows, tb)
    if steps > 1 and steps % 2:
        for cand in (tb + 8, tb - 8, tb + 16, tb - 16):
            if 8 <= cand <= tb_vmem and _cdiv(n_rows, cand) % 2 == 0:
                tb = cand
                break
    return tb


def _kernel_packed(x_ref, w_ref, b_ref, o_ref):
    # x (tb, k*d) @ block-diagonal w (k*d, k) on the MXU, f32 accumulation, + SMEM scalar bias.
    acc = jnp.dot(x_ref[...], w_ref[...], preferred_element_type=jnp.float32)
    o_ref[...] = (acc + b_ref[0, 0]).astype(o_ref.dtype)


def _kernel_direct(x_ref, w_ref, b_ref, o_ref):
    # x (tb, d) contracted with lane-dense w (1, d) over the last axes -> (tb, 1).
    acc = lax.dot_general(
        x_ref[...], w_ref[...],
        dimension_numbers=(((1,), (1,)), ((), ())),
        preferred_element_type=jnp.float32,
    )
    o_ref[...] = (acc + b_ref[0, 0]).astype(o_ref.dtype)


def _run_matvec(kernel, x2d, w2d, b, out_cols, flops):
    rows, cols = x2d.shape
    row_bytes = cols * x2d.dtype.itemsize
    w_bytes = w2d.size * w2d.dtype.itemsize
    # budget: 2 x-tile buffers + (up to) 2 weight buffers + small output buffers
    x_budget = min(2 * _MAX_X_TILE_BYTES,
                   max(4 * 1024 * 1024, _VMEM_BUDGET_BYTES - 2 * w_bytes))
    tb = _choose_row_tile(rows, row_bytes, x_budget)
    grid = (_cdiv(rows, tb),)   # ragged edge block is masked by Pallas -> no wrapper padding

    return pl.pallas_call(
        kernel,
        out_shape=jax.ShapeDtypeStruct((rows, out_cols), x2d.dtype),
        grid=grid,
        in_specs=[
            pl.BlockSpec((tb, cols), lambda i: (i, 0)),           # streamed, double-buffered
            pl.BlockSpec(w2d.shape, lambda i: (0, 0)),            # VMEM-resident weight
            pl.BlockSpec(memory_space=pltpu.MemorySpace.SMEM),    # bias scalar in SMEM
        ],
        out_specs=pl.BlockSpec((tb, out_cols), lambda i: (i, 0)),
        compiler_params=pltpu.CompilerParams(
            dimension_semantics=("parallel",),    # lets v7x shard the batch grid over 2 TCs
            vmem_limit_bytes=_VMEM_LIMIT_BYTES,
        ),
        cost_estimate=pl.CostEstimate(
            flops=flops,
            transcendentals=0,
            bytes_accessed=(x2d.size * x2d.dtype.itemsize + w_bytes
                            + rows * out_cols * x2d.dtype.itemsize),
        ),
    )(x2d, w2d, b)


def _forward_packed(x, w, b):
    """d < 128: pack k rows per kernel row so the output block is lane-dense (tb, k)."""
    B, d = x.shape
    k0 = 128 // math.gcd(d, 128)                        # smallest k with (k*d) % 128 == 0
    m_pref = max(1, _cdiv(16, k0), _cdiv(512, k0 * d))  # aim for k >= 16 and k*d >= 512
    k = k0 * m_pref
    for m in range(m_pref, 0, -1):                      # prefer a k dividing B -> free reshape
        if B % (k0 * m) == 0:
            k = k0 * m
            break

    n_packs = B // k
    tail = B - n_packs * k
    if n_packs == 0:
        # batch smaller than one pack: tiny pad (< k rows), padded rows sliced off below
        x_kern = jnp.pad(x, ((0, k - B), (0, 0)))
        n_packs, tail = 1, 0
    elif tail:
        # rare (B not a multiple of k0): sub-pack tail handled in plain JAX below
        x_kern = lax.slice_in_dim(x, 0, n_packs * k, axis=0)
    else:
        x_kern = x

    xg = x_kern.reshape(n_packs, k * d)                 # free row-major view
    # block-diagonal weight: column j holds w in rows j*d : (j+1)*d  -> shape (k*d, k)
    wb = (jnp.eye(k, dtype=x.dtype)[:, None, :] * w.reshape(1, d, 1)).reshape(k * d, k)

    yg = _run_matvec(_kernel_packed, xg, wb, b, out_cols=k,
                     flops=2 * n_packs * (k * d) * k)   # (n_packs, k)
    y = yg.reshape(n_packs * k, 1)
    if tail:
        y_tail = x[n_packs * k:] @ w + b.reshape(1, 1)  # < k rows, negligible
        return jnp.concatenate([y, y_tail], axis=0)
    return y[:B]


def _forward_direct(x, w, b):
    """d >= 128: stream x tiles, keep w lane-dense as a (1, d) row, contract on the MXU."""
    B, d = x.shape
    return _run_matvec(_kernel_direct, x, w.reshape(1, d), b, out_cols=1, flops=2 * B * d)


def linear_forward(x, w, b):
    """x: (B, d) f32, w: (d, 1) f32 (== W^T), b: (1, 1) f32 -> (B, 1) f32."""
    _, d = x.shape
    if d < 128:
        return _forward_packed(x, w, b)
    return _forward_direct(x, w, b)


def init_params(key, d):
    # Deterministic init mimicking PyTorch nn.Linear default: U(-1/sqrt(d), 1/sqrt(d))
    kw, kb = jax.random.split(key)
    bound = 1.0 / jnp.sqrt(jnp.float32(d))
    w = jax.random.uniform(kw, (d, 1), jnp.float32, -bound, bound)  # (d, 1) == W^T
    b = jax.random.uniform(kb, (1, 1), jnp.float32, -bound, bound)
    return w, b


if __name__ == "__main__":
    key = jax.random.PRNGKey(0)
    kx, kp = jax.random.split(key)

    # Small-d packed path (mirrors the PyTorch module with d=32)
    batch, d = 8, 32
    x = jax.random.normal(kx, (batch, d), jnp.float32)
    w, b = init_params(kp, d)
    y = linear_forward(x, w, b)
    jax.block_until_ready(y)
    assert y.shape == (batch, 1)
    assert jnp.allclose(y, x @ w + b, atol=1e-5), "mismatch vs reference (packed path)"

    # Ragged batch smaller than one pack (exercises the tiny-pad branch)
    x2 = jax.random.normal(kx, (13, d), jnp.float32)
    y2 = linear_forward(x2, w, b)
    jax.block_until_ready(y2)
    assert y2.shape == (13, 1)
    assert jnp.allclose(y2, x2 @ w + b, atol=1e-5), "mismatch vs reference (packed, ragged)"

    # Large-d direct path with a ragged grid edge (no wrapper padding)
    d3, batch3 = 256, 20
    x3 = jax.random.normal(kx, (batch3, d3), jnp.float32)
    w3, b3 = init_params(kp, d3)
    y3 = linear_forward(x3, w3, b3)
    jax.block_until_ready(y3)
    assert y3.shape == (batch3, 1)
    assert jnp.allclose(y3, x3 @ w3 + b3, atol=1e-4), "mismatch vs reference (direct path)"

    print("KERNEL_OK")
</pallas_src>

<mosaic_0001>
module attributes {stable_mosaic.version = 11 : i64} {
  func.func @_kernel_packed(%arg0: i32, %arg1: memref<8x256xf32, #tpu.memory_space<vmem>>, %arg2: memref<256x8xf32, #tpu.memory_space<vmem>>, %arg3: memref<1x1xf32, #tpu.memory_space<smem>>, %arg4: memref<8x8xf32, #tpu.memory_space<vmem>>) attributes {dimension_semantics = [#tpu.dimension_semantics<parallel>], iteration_bounds = array<i64: 1>, scalar_prefetch = 0 : i64, scratch_operands = 0 : i64, tpu.core_type = #tpu.core_type<tc>, window_params = [{transform_indices = @transform_0, window_bounds = array<i64: 8, 256>}, {pipeline_mode = #tpu.pipeline_mode<synchronous>, transform_indices = @transform_1, window_bounds = array<i64: 256, 8>}, {transform_indices = @transform_2, window_bounds = array<i64: 1, 1>}, {transform_indices = @transform_3, window_bounds = array<i64: 8, 8>}]} {
    %c0 = arith.constant 0 : index
    %c0_0 = arith.constant 0 : index
    %0 = vector.load %arg1[%c0, %c0_0] : memref<8x256xf32, #tpu.memory_space<vmem>>, vector<8x256xf32>
    %c0_1 = arith.constant 0 : index
    %c0_2 = arith.constant 0 : index
    %1 = vector.load %arg2[%c0_1, %c0_2] : memref<256x8xf32, #tpu.memory_space<vmem>>, vector<256x8xf32>
    %cst = arith.constant dense<0.000000e+00> : vector<8x8xf32>
    %2 = tpu.matmul %0, %1, %cst {dimension_numbers = #tpu.dot_dimension_numbers<[1], [0], [0], [1], [0, 0, 1, 1], [], []>} : vector<8x256xf32>, vector<256x8xf32>, vector<8x8xf32> -> vector<8x8xf32>
    %c0_3 = arith.constant 0 : index
    %c0_4 = arith.constant 0 : index
    %3 = memref.load %arg3[%c0_3, %c0_4] : memref<1x1xf32, #tpu.memory_space<smem>>
    %4 = vector.broadcast %3 : f32 to vector<8x8xf32>
    %5 = arith.addf %2, %4 : vector<8x8xf32>
    %c0_5 = arith.constant 0 : index
    %c0_6 = arith.constant 0 : index
    %6 = vector.load %arg4[%c0_5, %c0_6] : memref<8x8xf32, #tpu.memory_space<vmem>>, vector<8x8xf32>
    tpu.vector_store %arg4[%c0_5, %c0_6], %5 {strides = array<i32>} : memref<8x8xf32, #tpu.memory_space<vmem>>, vector<8x8xf32>,
    return
  }
  func.func @transform_0(%arg0: i32) -> (i32, i32) {
    %c0_i32 = arith.constant 0 : i32
    %c0_i32_0 = arith.constant 0 : i32
    return %arg0, %c0_i32 : i32, i32
  }
  func.func @transform_1(%arg0: i32) -> (i32, i32) {
    %c0_i32 = arith.constant 0 : i32
    %c0_i32_0 = arith.constant 0 : i32
    %c0_i32_1 = arith.constant 0 : i32
    return %c0_i32, %c0_i32_0 : i32, i32
  }
  func.func @transform_2(%arg0: i32) -> (i32, i32) {
    %c0_i32 = arith.constant 0 : i32
    %c0_i32_0 = arith.constant 0 : i32
    %c0_i32_1 = arith.constant 0 : i32
    return %c0_i32, %c0_i32_0 : i32, i32
  }
  func.func @transform_3(%arg0: i32) -> (i32, i32) {
    %c0_i32 = arith.constant 0 : i32
    %c0_i32_0 = arith.constant 0 : i32
    return %arg0, %c0_i32 : i32, i32
  }
}

</mosaic_0001>

<llo_original>
// kernel: tpu_custom_call.1
$region0: #{tpu_custom_call.1}
  #allocation0 [shape = 'u32[]', space=smem, size = 0x4, offset = 0x4, fixed_abs, tag = 'smem constant byte address 0x4 - core index']
  #allocation1 [shape = 'u32[72,128]{1,0:T(1,128)}', space=vmem, size = 0x9000, scoped, tag = 'internal scratch']
  #allocation2 [shape = 'f32[1,1]{1,0:T(1,128)S(6)}', space=smem, size = 0x200, scoped, tag = 'scoped memory for tpu_custom_call.1']
  %s0 = inlined_call_operand.vmem [shape: f32[1,256], index: 0, kind: input, shape index: {}]
  %s1 = inlined_call_operand.vmem [shape: f32[256,8], index: 1, kind: input, shape index: {}]
  %s2 = inlined_call_operand.<no memory space> [shape: f32[1,1], index: 2, kind: input, shape index: {}]
  %s3 = inlined_call_operand.hbm [shape: f32[1,8], index: 3, kind: output, shape index: {}]
  %s4 = sld [smem:[#allocation0]]
  $region22: #{tpu_custom_call.1} parent=0
    _
  %s6 = ssub.s32 1, %s4
  %s7 = scalar_select 0, %s6, %s4
  %8 = sst [smem:[#allocation2]] %s2
  $region1: #{tpu_custom_call.1} parent=0
    #allocation3 [shape = 'u8[4096]{0}', space=vmem, size = 0x1000, scoped, tag = 'output window, operand 0, single buffered']
    #allocation4 [shape = 's32[1]{0}', space=sflag, size = 0x4, scoped, tag = 'scoped memory for tpu_custom_call.1']
    %9 = vsyncpa [#allocation4], 0
    // Predicated region
    $region2: #{tpu_custom_call.1} parent=1 // pred_check
      _
    $region3: #{tpu_custom_call.1} parent=1 // pred_check_branch
      %11 = sbr.rel (0) target = $region5
    $region4: #{tpu_custom_call.1} parent=1 // pred_region
      _
    $region5: #{tpu_custom_call.1} parent=1 // pred_fallthru
      _
    // Predicated region
    $region6: #{tpu_custom_call.1} parent=1 // pred_check
      _
    $region7: #{tpu_custom_call.1} parent=1 // pred_check_branch
      %13 = sbr.rel (0) target = $region9
    $region8: #{tpu_custom_call.1} parent=1 // pred_region
      _
    $region9: #{tpu_custom_call.1} parent=1 // pred_fallthru
      _
    // Predicated region
    $region10: #{tpu_custom_call.1} parent=1 // pred_check
      _
    $region11: #{tpu_custom_call.1} parent=1 // pred_check_branch
      %15 = sbr.rel (0) target = $region13
    $region12: #{tpu_custom_call.1} parent=1 // pred_region
      _
    $region13: #{tpu_custom_call.1} parent=1 // pred_fallthru
      _
    %v16 = vld [vmem:[%s0] sm:$0x3]
    %v17 = vld [vmem:[%s0 + $0x2] sm:$0x3]
    %v18 = vld [vmem:[%s0 + $0x4] sm:$0x3]
    %v19 = vld [vmem:[%s0 + $0x6] sm:$0x3]
    %v20 = vld [vmem:[%s0 + $0x8] sm:$0x3]
    %v21 = vld [vmem:[%s0 + $0xa] sm:$0x3]
    %v22 = vld [vmem:[%s0 + $0xc] sm:$0x3]
    %v23 = vld [vmem:[%s0 + $0xe] sm:$0x3]
    %v24 = vld [vmem:[%s1] sm:$0xff]
    %v25 = vld [vmem:[%s1 + $0x8] sm:$0xff]
    %v26 = vld [vmem:[%s1 + $0x10] sm:$0xff]
    %v27 = vld [vmem:[%s1 + $0x18] sm:$0xff]
    %v28 = vld [vmem:[%s1 + $0x20] sm:$0xff]
    %v29 = vld [vmem:[%s1 + $0x28] sm:$0xff]
    %v30 = vld [vmem:[%s1 + $0x30] sm:$0xff]
    %v31 = vld [vmem:[%s1 + $0x38] sm:$0xff]
    %v32 = vld [vmem:[%s1 + $0x40] sm:$0xff]
    %v33 = vld [vmem:[%s1 + $0x48] sm:$0xff]
    %v34 = vld [vmem:[%s1 + $0x50] sm:$0xff]
    %v35 = vld [vmem:[%s1 + $0x58] sm:$0xff]
    %v36 = vld [vmem:[%s1 + $0x60] sm:$0xff]
    %v37 = vld [vmem:[%s1 + $0x68] sm:$0xff]
    %v38 = vld [vmem:[%s1 + $0x70] sm:$0xff]
    %v39 = vld [vmem:[%s1 + $0x78] sm:$0xff]
    %v40 = vld [vmem:[%s1 + $0x80] sm:$0xff]
    %v41 = vld [vmem:[%s1 + $0x88] sm:$0xff]
    %v42 = vld [vmem:[%s1 + $0x90] sm:$0xff]
    %v43 = vld [vmem:[%s1 + $0x98] sm:$0xff]
    %v44 = vld [vmem:[%s1 + $0xa0] sm:$0xff]
    %v45 = vld [vmem:[%s1 + $0xa8] sm:$0xff]
    %v46 = vld [vmem:[%s1 + $0xb0] sm:$0xff]
    %v47 = vld [vmem:[%s1 + $0xb8] sm:$0xff]
    %v48 = vld [vmem:[%s1 + $0xc0] sm:$0xff]
    %v49 = vld [vmem:[%s1 + $0xc8] sm:$0xff]
    %v50 = vld [vmem:[%s1 + $0xd0] sm:$0xff]
    %v51 = vld [vmem:[%s1 + $0xd8] sm:$0xff]
    %v52 = vld [vmem:[%s1 + $0xe0] sm:$0xff]
    %v53 = vld [vmem:[%s1 + $0xe8] sm:$0xff]
    %v54 = vld [vmem:[%s1 + $0xf0] sm:$0xff]
    %v55 = vld [vmem:[%s1 + $0xf8] sm:$0xff]
    %s56 = sld [smem:[#allocation2]]
    %v57 = vstv %s56
    %66 = vst [vmem:[#allocation1] ss:$9 sm:$0xff] %v16
    %s67 = scalar_lea.vmem [#allocation1], 1
    %68 = vst [vmem:[%s67] ss:$9 sm:$0xff] %v17
    %s69 = scalar_lea.vmem [#allocation1], 2
    %70 = vst [vmem:[%s69] ss:$9 sm:$0xff] %v18
    %s71 = scalar_lea.vmem [#allocation1], 3
    %72 = vst [vmem:[%s71] ss:$9 sm:$0xff] %v19
    %s73 = scalar_lea.vmem [#allocation1], 4
    %74 = vst [vmem:[%s73] ss:$9 sm:$0xff] %v20
    %s75 = scalar_lea.vmem [#allocation1], 5
    %76 = vst [vmem:[%s75] ss:$9 sm:$0xff] %v21
    %s77 = scalar_lea.vmem [#allocation1], 6
    %78 = vst [vmem:[%s77] ss:$9 sm:$0xff] %v22
    %s79 = scalar_lea.vmem [#allocation1], 7
    %80 = vst [vmem:[%s79] ss:$9 sm:$0xff] %v23
    %v81 = vld [vmem:[#allocation1] sm:$0xff]
    %v82 = vld [vmem:[#allocation1 + $0x9] sm:$0xff]
    %85 = vmatpush.msra.mxu0 %v39
    %86 = vmatpush.msra.mxu0 %v38
    %87 = vmatpush.msra.mxu0 %v37
    %88 = vmatpush.msra.mxu0 %v36
    %89 = vmatpush.msra.mxu0 %v35
    %90 = vmatpush.msra.mxu0 %v34
    %91 = vmatpush.msra.mxu0 %v33
    %92 = vmatpush.msra.mxu0 %v32
    %93 = vmatpush.msra.mxu0 %v31
    %94 = vmatpush.msra.mxu0 %v30
    %95 = vmatpush.msra.mxu0 %v29
    %96 = vmatpush.msra.mxu0 %v28
    %97 = vmatpush.msra.mxu0 %v27
    %98 = vmatpush.msra.mxu0 %v26
    %99 = vmatpush.msra.mxu0 %v25
    %100 = vmatpush.msra.mxu0 %v24
    %101 = vmatmul.f32.gmra.mxu0 %v81
    %v102 = vpop.f32.mrf.mxu0
    %v103 = vadd.f32 %v57, %v102
    %104 = vdwg.mxu0
    %105 = vmatpush.msra.mxu0 %v55
    %106 = vmatpush.msra.mxu0 %v54
    %107 = vmatpush.msra.mxu0 %v53
    %108 = vmatpush.msra.mxu0 %v52
    %109 = vmatpush.msra.mxu0 %v51
    %110 = vmatpush.msra.mxu0 %v50
    %111 = vmatpush.msra.mxu0 %v49
    %112 = vmatpush.msra.mxu0 %v48
    %113 = vmatpush.msra.mxu0 %v47
    %114 = vmatpush.msra.mxu0 %v46
    %115 = vmatpush.msra.mxu0 %v45
    %116 = vmatpush.msra.mxu0 %v44
    %117 = vmatpush.msra.mxu0 %v43
    %118 = vmatpush.msra.mxu0 %v42
    %119 = vmatpush.msra.mxu0 %v41
    %120 = vmatpush.msra.mxu0 %v40
    %121 = vmatmul.f32.gmra.mxu0 %v82
    %v122 = vpop.f32.mrf.mxu0
    %v123 = vadd.f32 %v103, %v122
    %124 = vdwg.mxu0
    %vm125 = vcmask 64512
    %126 = vst.msk [vmem:[#allocation3] sm:$0xff] %vm125, %v123
    // Predicated region
    $region14: #{tpu_custom_call.1} parent=1 // pred_check
      _
    $region15: #{tpu_custom_call.1} parent=1 // pred_check_branch
      %128 = sbr.rel (0) target = $region17
    $region16: #{tpu_custom_call.1} parent=1 // pred_region
      %130 = vsyncadd [#allocation4], 112
      %s131 = sshll.u32 [#allocation3], 4
      %s132 = int_to_ptr.vmem [resolvable:$true] %s131
      %s133 = sshll.u32 %s3, 4
      %s134 = int_to_ptr.hbm [resolvable:$true] %s133
      %139 = dma.vmem_to_hbm [thread:$0]  %s132, 16, %s134, [#allocation4], 16, 16, 1
    $region17: #{tpu_custom_call.1} parent=1 // pred_fallthru
      _
    // Predicated region
    $region18: #{tpu_custom_call.1} parent=1 // pred_check
      _
    $region19: #{tpu_custom_call.1} parent=1 // pred_check_branch
      %141 = sbr.rel (0) target = $region21
    $region20: #{tpu_custom_call.1} parent=1 // pred_region
      %143 = dma.done [#allocation4], 128
    $region21: #{tpu_custom_call.1} parent=1 // pred_fallthru
      _
    %144 = vsyncpa [#allocation4], 1

</llo_original>
